<compile_context>
chip_gen: v5e
topology: v5e:2x2
jax: 0.10.0
libtpu: 0.0.40
codegen_flags: <defaults>
</compile_context>

<pallas_src>
import jax
import jax.numpy as jnp
from jax.experimental import pallas as pl
from jax.experimental.pallas import tpu as pltpu


# ------------------------------ fused kernel --------------------------------


def edge_net_kernel(x_ref, gcat_ref, inv_deg_ref, p_ref, out_ref):
    B = p_ref.shape[1]            # big_dim == padded feature width
    N = x_ref.shape[0]
    brow = 8 * B                  # first bias row of the parameter slab

    # Promote the bf16 0/1 gather matrix once (exact) so all MXU math is f32.
    gcat = gcat_ref[...].astype(jnp.float32)      # [E, 2N] = [Gt | Gs]
    gt = gcat[:, :N]                              # [E, N] target one-hot
    inv_deg = inv_deg_ref[...]                    # [N, 1] f32 (0 if isolated)

    # ---- BatchNorm1d (training-mode batch statistics) ----
    x = x_ref[...]                                # [N, B] (zero-padded cols)
    gamma = p_ref[brow + 6:brow + 7, :]
    beta = p_ref[brow + 7:brow + 8, :]
    mean = jnp.mean(x, axis=0, keepdims=True)
    var = jnp.mean((x - mean) ** 2, axis=0, keepdims=True)
    h = (x - mean) * jax.lax.rsqrt(var + 1e-5) * gamma + beta

    def edgeconv(hin, w0, b0, last_relu):
        # Static slab views: 4 weight blocks of B rows + 3 bias rows.
        w1a = p_ref[(w0 + 0) * B:(w0 + 1) * B, :]   # W1a - W1b (target path)
        w1b = p_ref[(w0 + 1) * B:(w0 + 2) * B, :]   # W1b       (source path)
        w2 = p_ref[(w0 + 2) * B:(w0 + 3) * B, :]
        w3 = p_ref[(w0 + 3) * B:(w0 + 4) * B, :]
        b1 = p_ref[brow + b0 + 0:brow + b0 + 1, :]
        b2 = p_ref[brow + b0 + 1:brow + b0 + 2, :]
        b3 = p_ref[brow + b0 + 2:brow + b0 + 3, :]

        # Node-level projections, then ONE fused gather matmul over [Gt | Gs].
        pa = jnp.dot(hin, w1a, preferred_element_type=jnp.float32)
        pb = jnp.dot(hin, w1b, preferred_element_type=jnp.float32)
        stacked = jnp.concatenate([pa, pb], axis=0)               # [2N, B]
        m = jnp.dot(gcat, stacked, preferred_element_type=jnp.float32) + b1
        m = jnp.maximum(m, 0.0)
        m = jnp.dot(m, w2, preferred_element_type=jnp.float32) + b2
        m = jnp.maximum(m, 0.0)
        m = jnp.dot(m, w3, preferred_element_type=jnp.float32) + b3
        if last_relu:
            m = jnp.maximum(m, 0.0)
        # Mean aggregation at targets: contract the edge axis of Gt (scatter
        # via transposed-LHS matmul), then a cheap f32 VPU multiply by 1/deg.
        agg = jax.lax.dot_general(gt, m, (((0,), (0,)), ((), ())),
                                  preferred_element_type=jnp.float32)
        return agg * inv_deg

    h = edgeconv(h, 0, 0, True)               # encoder EdgeConv (ends in ReLU)
    out_ref[...] = edgeconv(h, 4, 3, False)   # decoder EdgeConv (no final ReLU)


# ------------------------------ JAX wrapper ---------------------------------

_VMEM = pl.BlockSpec(memory_space=pltpu.MemorySpace.VMEM)


def _pad2(a, rows, cols):
    r, c = a.shape
    return jnp.pad(a, ((0, rows - r), (0, cols - c)))


def _mlp_rows(mlp, fin, big):
    """Split the cat([xi, xj-xi]) linear, fold the subtraction, pad to big x big."""
    (w1, b1), (w2, b2), (w3, b3) = mlp
    w1a, w1b = w1[:fin], w1[fin:]
    w1a = w1a - w1b          # xi@W1a + (xj-xi)@W1b == xi@(W1a-W1b) + xj@W1b
    w_rows = [_pad2(w1a, big, big), _pad2(w1b, big, big),
              _pad2(w2, big, big), _pad2(w3, big, big)]
    b_rows = [_pad2(b1.reshape(1, -1), 1, big), _pad2(b2.reshape(1, -1), 1, big),
              _pad2(b3.reshape(1, -1), 1, big)]
    return w_rows, b_rows


def edge_net(x, edge_index, params):
    n, fin = x.shape
    src, tgt = edge_index[0], edge_index[1]

    big = params["encoder"][0][0].shape[1]          # big_dim
    hidden = params["encoder"][-1][0].shape[1]      # hidden_dim
    fout = params["decoder"][-1][0].shape[1]
    assert fin <= big and hidden <= big and fout <= big

    # One fused [Gt | Gs] gather matrix, built directly in bf16 (exact 0/1).
    gt = jax.nn.one_hot(tgt, n, dtype=jnp.bfloat16)   # [E, N]
    gs = jax.nn.one_hot(src, n, dtype=jnp.bfloat16)   # [E, N]
    gcat = jnp.concatenate([gt, gs], axis=1)          # [E, 2N]

    # In-degree via segment-sum (exact f32), not by reducing a dense one-hot.
    deg = jnp.zeros((n,), jnp.float32).at[tgt].add(1.0)
    inv_deg = jnp.where(deg > 0, 1.0 / jnp.maximum(deg, 1.0), 0.0).reshape(n, 1)

    # One parameter slab: 8 weight blocks of `big` rows, then 8 bias/BN rows.
    enc_w, enc_b = _mlp_rows(params["encoder"], fin, big)
    dec_w, dec_b = _mlp_rows(params["decoder"], hidden, big)
    gamma_r = _pad2(params["bn_gamma"].reshape(1, -1), 1, big)
    beta_r = _pad2(params["bn_beta"].reshape(1, -1), 1, big)
    slab = jnp.concatenate(enc_w + dec_w + enc_b + dec_b + [gamma_r, beta_r],
                           axis=0).astype(jnp.float32)

    x_pad = _pad2(x.astype(jnp.float32), n, big)

    out = pl.pallas_call(
        edge_net_kernel,
        out_shape=jax.ShapeDtypeStruct((n, big), jnp.float32),
        in_specs=[_VMEM] * 4,
        out_specs=_VMEM,
        compiler_params=pltpu.CompilerParams(vmem_limit_bytes=32 * 1024 * 1024),
    )(x_pad, gcat, inv_deg, slab)
    return out[:, :fout]


# ------------------------- deterministic parameters -------------------------


def init_linear(key, fan_in, fan_out):
    kw, kb = jax.random.split(key)
    bound = 1.0 / jnp.sqrt(float(fan_in))
    w = jax.random.uniform(kw, (fan_in, fan_out), jnp.float32, -bound, bound)
    b = jax.random.uniform(kb, (fan_out,), jnp.float32, -bound, bound)
    return w, b


def init_mlp(key, dims):
    keys = jax.random.split(key, len(dims) - 1)
    return [init_linear(k, dims[i], dims[i + 1]) for i, k in enumerate(keys)]


def make_params(key, input_dim=4, big_dim=32, hidden_dim=2):
    k1, k2 = jax.random.split(key, 2)
    return {
        "bn_gamma": jnp.ones((input_dim,), jnp.float32),
        "bn_beta": jnp.zeros((input_dim,), jnp.float32),
        # encoder: Lin(2*in, big) ReLU Lin(big, big) ReLU Lin(big, hidden) ReLU
        "encoder": init_mlp(k1, [2 * input_dim, big_dim, big_dim, hidden_dim]),
        # decoder: Lin(2*hidden, big) ReLU Lin(big, big) ReLU Lin(big, in)
        "decoder": init_mlp(k2, [2 * hidden_dim, big_dim, big_dim, input_dim]),
    }


# --------------------------- pure-JAX reference -----------------------------


def edgeconv_ref(x, src, tgt, mlp, last_relu):
    n = x.shape[0]
    xi = x[tgt]
    xj = x[src]
    h = jnp.concatenate([xi, xj - xi], axis=-1)
    (w1, b1), (w2, b2), (w3, b3) = mlp
    h = jnp.maximum(h @ w1 + b1, 0.0)
    h = jnp.maximum(h @ w2 + b2, 0.0)
    h = h @ w3 + b3
    if last_relu:
        h = jnp.maximum(h, 0.0)
    summed = jnp.zeros((n, h.shape[1]), jnp.float32).at[tgt].add(h)
    cnt = jnp.zeros((n,), jnp.float32).at[tgt].add(1.0)
    inv = jnp.where(cnt > 0, 1.0 / jnp.maximum(cnt, 1.0), 0.0)
    return summed * inv[:, None]


def edge_net_ref(x, edge_index, params):
    src, tgt = edge_index[0], edge_index[1]
    mean = jnp.mean(x, axis=0, keepdims=True)
    var = jnp.mean((x - mean) ** 2, axis=0, keepdims=True)
    h = (x - mean) / jnp.sqrt(var + 1e-5) * params["bn_gamma"] + params["bn_beta"]
    h = edgeconv_ref(h, src, tgt, params["encoder"], True)
    h = edgeconv_ref(h, src, tgt, params["decoder"], False)
    return h


# ---------------------------------- main ------------------------------------

if __name__ == "__main__":
    INPUT_DIM, BIG_DIM, HIDDEN_DIM = 4, 32, 2
    N_NODES, N_EDGES = 8, 16

    key = jax.random.PRNGKey(0)
    kx, ke, kp = jax.random.split(key, 3)

    x = jax.random.normal(kx, (N_NODES, INPUT_DIM), jnp.float32)
    edge_index = jax.random.randint(ke, (2, N_EDGES), 0, N_NODES, jnp.int32)
    params = make_params(kp, INPUT_DIM, BIG_DIM, HIDDEN_DIM)

    out = edge_net(x, edge_index, params)
    out = jax.block_until_ready(out)

    ref = edge_net_ref(x, edge_index, params)
    assert out.shape == (N_NODES, INPUT_DIM)
    assert jnp.allclose(out, ref, atol=1e-4, rtol=1e-4), "mismatch vs JAX reference"

    print("KERNEL_OK")
</pallas_src>

<mosaic_0001>
module attributes {stable_mosaic.version = 11 : i64} {
  func.func @edge_net_kernel(%arg0: memref<8x32xf32, #tpu.memory_space<vmem>>, %arg1: memref<16x16xbf16, #tpu.memory_space<vmem>>, %arg2: memref<8x1xf32, #tpu.memory_space<vmem>>, %arg3: memref<264x32xf32, #tpu.memory_space<vmem>>, %arg4: memref<8x32xf32, #tpu.memory_space<vmem>>) attributes {dimension_semantics = [], scalar_prefetch = 0 : i64, scratch_operands = 0 : i64, tpu.core_type = #tpu.core_type<tc>} {
    %c0 = arith.constant 0 : index
    %c0_0 = arith.constant 0 : index
    %0 = vector.load %arg1[%c0, %c0_0] : memref<16x16xbf16, #tpu.memory_space<vmem>>, vector<16x16xbf16>
    %1 = arith.extf %0 : vector<16x16xbf16> to vector<16x16xf32>
    %2 = vector.extract_strided_slice %1 {offsets = [0, 0], sizes = [16, 8], strides = [1, 1]} : vector<16x16xf32> to vector<16x8xf32>
    %c0_1 = arith.constant 0 : index
    %c0_2 = arith.constant 0 : index
    %3 = vector.load %arg2[%c0_1, %c0_2] : memref<8x1xf32, #tpu.memory_space<vmem>>, vector<8x1xf32>
    %c0_3 = arith.constant 0 : index
    %c0_4 = arith.constant 0 : index
    %4 = vector.load %arg0[%c0_3, %c0_4] : memref<8x32xf32, #tpu.memory_space<vmem>>, vector<8x32xf32>
    %c262 = arith.constant 262 : index
    %c0_5 = arith.constant 0 : index
    %5 = vector.load %arg3[%c262, %c0_5] : memref<264x32xf32, #tpu.memory_space<vmem>>, vector<1x32xf32>
    %c263 = arith.constant 263 : index
    %c0_6 = arith.constant 0 : index
    %6 = vector.load %arg3[%c263, %c0_6] : memref<264x32xf32, #tpu.memory_space<vmem>>, vector<1x32xf32>
    %cst = arith.constant dense<0.000000e+00> : vector<32xf32>
    %7 = vector.multi_reduction <add>, %4, %cst [0] : vector<8x32xf32> to vector<32xf32>
    %8 = vector.shape_cast %7 : vector<32xf32> to vector<1x32xf32>
    %cst_7 = arith.constant 8.000000e+00 : f32
    %9 = vector.broadcast %cst_7 : f32 to vector<1x32xf32>
    %10 = arith.divf %8, %9 : vector<1x32xf32>
    %11 = vector.broadcast %10 : vector<1x32xf32> to vector<8x32xf32>
    %12 = arith.subf %4, %11 : vector<8x32xf32>
    %13 = arith.mulf %12, %12 : vector<8x32xf32>
    %cst_8 = arith.constant dense<0.000000e+00> : vector<32xf32>
    %14 = vector.multi_reduction <add>, %13, %cst_8 [0] : vector<8x32xf32> to vector<32xf32>
    %15 = vector.shape_cast %14 : vector<32xf32> to vector<1x32xf32>
    %cst_9 = arith.constant 8.000000e+00 : f32
    %16 = vector.broadcast %cst_9 : f32 to vector<1x32xf32>
    %17 = arith.divf %15, %16 : vector<1x32xf32>
    %18 = vector.broadcast %10 : vector<1x32xf32> to vector<8x32xf32>
    %19 = arith.subf %4, %18 : vector<8x32xf32>
    %cst_10 = arith.constant 9.99999974E-6 : f32
    %20 = vector.broadcast %cst_10 : f32 to vector<1x32xf32>
    %21 = arith.addf %17, %20 : vector<1x32xf32>
    %22 = math.rsqrt %21 : vector<1x32xf32>
    %23 = vector.broadcast %22 : vector<1x32xf32> to vector<8x32xf32>
    %24 = arith.mulf %19, %23 : vector<8x32xf32>
    %25 = vector.broadcast %5 : vector<1x32xf32> to vector<8x32xf32>
    %26 = arith.mulf %24, %25 : vector<8x32xf32>
    %27 = vector.broadcast %6 : vector<1x32xf32> to vector<8x32xf32>
    %28 = arith.addf %26, %27 : vector<8x32xf32>
    %c0_11 = arith.constant 0 : index
    %c0_12 = arith.constant 0 : index
    %29 = vector.load %arg3[%c0_11, %c0_12] : memref<264x32xf32, #tpu.memory_space<vmem>>, vector<32x32xf32>
    %c32 = arith.constant 32 : index
    %c0_13 = arith.constant 0 : index
    %30 = vector.load %arg3[%c32, %c0_13] : memref<264x32xf32, #tpu.memory_space<vmem>>, vector<32x32xf32>
    %c64 = arith.constant 64 : index
    %c0_14 = arith.constant 0 : index
    %31 = vector.load %arg3[%c64, %c0_14] : memref<264x32xf32, #tpu.memory_space<vmem>>, vector<32x32xf32>
    %c96 = arith.constant 96 : index
    %c0_15 = arith.constant 0 : index
    %32 = vector.load %arg3[%c96, %c0_15] : memref<264x32xf32, #tpu.memory_space<vmem>>, vector<32x32xf32>
    %c256 = arith.constant 256 : index
    %c0_16 = arith.constant 0 : index
    %33 = vector.load %arg3[%c256, %c0_16] : memref<264x32xf32, #tpu.memory_space<vmem>>, vector<1x32xf32>
    %c257 = arith.constant 257 : index
    %c0_17 = arith.constant 0 : index
    %34 = vector.load %arg3[%c257, %c0_17] : memref<264x32xf32, #tpu.memory_space<vmem>>, vector<1x32xf32>
    %c258 = arith.constant 258 : index
    %c0_18 = arith.constant 0 : index
    %35 = vector.load %arg3[%c258, %c0_18] : memref<264x32xf32, #tpu.memory_space<vmem>>, vector<1x32xf32>
    %cst_19 = arith.constant dense<0.000000e+00> : vector<8x32xf32>
    %36 = tpu.matmul %28, %29, %cst_19 {dimension_numbers = #tpu.dot_dimension_numbers<[1], [0], [0], [1], [0, 0, 1, 1], [], []>} : vector<8x32xf32>, vector<32x32xf32>, vector<8x32xf32> -> vector<8x32xf32>
    %cst_20 = arith.constant dense<0.000000e+00> : vector<8x32xf32>
    %37 = tpu.matmul %28, %30, %cst_20 {dimension_numbers = #tpu.dot_dimension_numbers<[1], [0], [0], [1], [0, 0, 1, 1], [], []>} : vector<8x32xf32>, vector<32x32xf32>, vector<8x32xf32> -> vector<8x32xf32>
    %38 = tpu.concatenate %36, %37 in 0 : vector<8x32xf32>, vector<8x32xf32> -> vector<16x32xf32>
    %cst_21 = arith.constant dense<0.000000e+00> : vector<16x32xf32>
    %39 = tpu.matmul %1, %38, %cst_21 {dimension_numbers = #tpu.dot_dimension_numbers<[1], [0], [0], [1], [0, 0, 1, 1], [], []>} : vector<16x16xf32>, vector<16x32xf32>, vector<16x32xf32> -> vector<16x32xf32>
    %40 = vector.broadcast %33 : vector<1x32xf32> to vector<16x32xf32>
    %41 = arith.addf %39, %40 : vector<16x32xf32>
    %cst_22 = arith.constant 0.000000e+00 : f32
    %42 = vector.broadcast %cst_22 : f32 to vector<16x32xf32>
    %43 = arith.maximumf %41, %42 : vector<16x32xf32>
    %cst_23 = arith.constant dense<0.000000e+00> : vector<16x32xf32>
    %44 = tpu.matmul %43, %31, %cst_23 {dimension_numbers = #tpu.dot_dimension_numbers<[1], [0], [0], [1], [0, 0, 1, 1], [], []>} : vector<16x32xf32>, vector<32x32xf32>, vector<16x32xf32> -> vector<16x32xf32>
    %45 = vector.broadcast %34 : vector<1x32xf32> to vector<16x32xf32>
    %46 = arith.addf %44, %45 : vector<16x32xf32>
    %cst_24 = arith.constant 0.000000e+00 : f32
    %47 = vector.broadcast %cst_24 : f32 to vector<16x32xf32>
    %48 = arith.maximumf %46, %47 : vector<16x32xf32>
    %cst_25 = arith.constant dense<0.000000e+00> : vector<16x32xf32>
    %49 = tpu.matmul %48, %32, %cst_25 {dimension_numbers = #tpu.dot_dimension_numbers<[1], [0], [0], [1], [0, 0, 1, 1], [], []>} : vector<16x32xf32>, vector<32x32xf32>, vector<16x32xf32> -> vector<16x32xf32>
    %50 = vector.broadcast %35 : vector<1x32xf32> to vector<16x32xf32>
    %51 = arith.addf %49, %50 : vector<16x32xf32>
    %cst_26 = arith.constant 0.000000e+00 : f32
    %52 = vector.broadcast %cst_26 : f32 to vector<16x32xf32>
    %53 = arith.maximumf %51, %52 : vector<16x32xf32>
    %cst_27 = arith.constant dense<0.000000e+00> : vector<8x32xf32>
    %54 = tpu.matmul %2, %53, %cst_27 {dimension_numbers = #tpu.dot_dimension_numbers<[0], [0], [1], [1], [0, 1, 1, 1], [], []>} : vector<16x8xf32>, vector<16x32xf32>, vector<8x32xf32> -> vector<8x32xf32>
    %55 = vector.broadcast %3 : vector<8x1xf32> to vector<8x32xf32>
    %56 = arith.mulf %54, %55 : vector<8x32xf32>
    %c128 = arith.constant 128 : index
    %c0_28 = arith.constant 0 : index
    %57 = vector.load %arg3[%c128, %c0_28] : memref<264x32xf32, #tpu.memory_space<vmem>>, vector<32x32xf32>
    %c160 = arith.constant 160 : index
    %c0_29 = arith.constant 0 : index
    %58 = vector.load %arg3[%c160, %c0_29] : memref<264x32xf32, #tpu.memory_space<vmem>>, vector<32x32xf32>
    %c192 = arith.constant 192 : index
    %c0_30 = arith.constant 0 : index
    %59 = vector.load %arg3[%c192, %c0_30] : memref<264x32xf32, #tpu.memory_space<vmem>>, vector<32x32xf32>
    %c224 = arith.constant 224 : index
    %c0_31 = arith.constant 0 : index
    %60 = vector.load %arg3[%c224, %c0_31] : memref<264x32xf32, #tpu.memory_space<vmem>>, vector<32x32xf32>
    %c259 = arith.constant 259 : index
    %c0_32 = arith.constant 0 : index
    %61 = vector.load %arg3[%c259, %c0_32] : memref<264x32xf32, #tpu.memory_space<vmem>>, vector<1x32xf32>
    %c260 = arith.constant 260 : index
    %c0_33 = arith.constant 0 : index
    %62 = vector.load %arg3[%c260, %c0_33] : memref<264x32xf32, #tpu.memory_space<vmem>>, vector<1x32xf32>
    %c261 = arith.constant 261 : index
    %c0_34 = arith.constant 0 : index
    %63 = vector.load %arg3[%c261, %c0_34] : memref<264x32xf32, #tpu.memory_space<vmem>>, vector<1x32xf32>
    %cst_35 = arith.constant dense<0.000000e+00> : vector<8x32xf32>
    %64 = tpu.matmul %56, %57, %cst_35 {dimension_numbers = #tpu.dot_dimension_numbers<[1], [0], [0], [1], [0, 0, 1, 1], [], []>} : vector<8x32xf32>, vector<32x32xf32>, vector<8x32xf32> -> vector<8x32xf32>
    %cst_36 = arith.constant dense<0.000000e+00> : vector<8x32xf32>
    %65 = tpu.matmul %56, %58, %cst_36 {dimension_numbers = #tpu.dot_dimension_numbers<[1], [0], [0], [1], [0, 0, 1, 1], [], []>} : vector<8x32xf32>, vector<32x32xf32>, vector<8x32xf32> -> vector<8x32xf32>
    %66 = tpu.concatenate %64, %65 in 0 : vector<8x32xf32>, vector<8x32xf32> -> vector<16x32xf32>
    %cst_37 = arith.constant dense<0.000000e+00> : vector<16x32xf32>
    %67 = tpu.matmul %1, %66, %cst_37 {dimension_numbers = #tpu.dot_dimension_numbers<[1], [0], [0], [1], [0, 0, 1, 1], [], []>} : vector<16x16xf32>, vector<16x32xf32>, vector<16x32xf32> -> vector<16x32xf32>
    %68 = vector.broadcast %61 : vector<1x32xf32> to vector<16x32xf32>
    %69 = arith.addf %67, %68 : vector<16x32xf32>
    %cst_38 = arith.constant 0.000000e+00 : f32
    %70 = vector.broadcast %cst_38 : f32 to vector<16x32xf32>
    %71 = arith.maximumf %69, %70 : vector<16x32xf32>
    %cst_39 = arith.constant dense<0.000000e+00> : vector<16x32xf32>
    %72 = tpu.matmul %71, %59, %cst_39 {dimension_numbers = #tpu.dot_dimension_numbers<[1], [0], [0], [1], [0, 0, 1, 1], [], []>} : vector<16x32xf32>, vector<32x32xf32>, vector<16x32xf32> -> vector<16x32xf32>
    %73 = vector.broadcast %62 : vector<1x32xf32> to vector<16x32xf32>
    %74 = arith.addf %72, %73 : vector<16x32xf32>
    %cst_40 = arith.constant 0.000000e+00 : f32
    %75 = vector.broadcast %cst_40 : f32 to vector<16x32xf32>
    %76 = arith.maximumf %74, %75 : vector<16x32xf32>
    %cst_41 = arith.constant dense<0.000000e+00> : vector<16x32xf32>
    %77 = tpu.matmul %76, %60, %cst_41 {dimension_numbers = #tpu.dot_dimension_numbers<[1], [0], [0], [1], [0, 0, 1, 1], [], []>} : vector<16x32xf32>, vector<32x32xf32>, vector<16x32xf32> -> vector<16x32xf32>
    %78 = vector.broadcast %63 : vector<1x32xf32> to vector<16x32xf32>
    %79 = arith.addf %77, %78 : vector<16x32xf32>
    %cst_42 = arith.constant dense<0.000000e+00> : vector<8x32xf32>
    %80 = tpu.matmul %2, %79, %cst_42 {dimension_numbers = #tpu.dot_dimension_numbers<[0], [0], [1], [1], [0, 1, 1, 1], [], []>} : vector<16x8xf32>, vector<16x32xf32>, vector<8x32xf32> -> vector<8x32xf32>
    %81 = vector.broadcast %3 : vector<8x1xf32> to vector<8x32xf32>
    %82 = arith.mulf %80, %81 : vector<8x32xf32>
    %c0_43 = arith.constant 0 : index
    %c0_44 = arith.constant 0 : index
    %83 = vector.load %arg4[%c0_43, %c0_44] : memref<8x32xf32, #tpu.memory_space<vmem>>, vector<8x32xf32>
    tpu.vector_store %arg4[%c0_43, %c0_44], %82 {strides = array<i32>} : memref<8x32xf32, #tpu.memory_space<vmem>>, vector<8x32xf32>,
    return
  }
}

</mosaic_0001>

<llo_original>
// kernel: tpu_custom_call.1
$region0: #{tpu_custom_call.1}
  #allocation0 [shape = 'u32[]', space=smem, size = 0x4, offset = 0x4, fixed_abs, tag = 'smem constant byte address 0x4 - core index']
  #allocation1 [shape = 'u32[72,128]{1,0:T(1,128)}', space=vmem, size = 0x9000, scoped, tag = 'internal scratch']
  %s0 = inlined_call_operand.vmem [shape: f32[8,32], index: 0, kind: input, shape index: {}]
  %s1 = inlined_call_operand.vmem [shape: bf16[16,16], index: 1, kind: input, shape index: {}]
  %s2 = inlined_call_operand.vmem [shape: f32[8,1], index: 2, kind: input, shape index: {}]
  %s3 = inlined_call_operand.vmem [shape: f32[264,32], index: 3, kind: input, shape index: {}]
  %s4 = inlined_call_operand.hbm [shape: f32[8,32], index: 4, kind: output, shape index: {}]
  %s5 = sld [smem:[#allocation0]]
  $region26: #{tpu_custom_call.1} parent=0
    _
  %s7 = ssub.s32 1, %s5
  %s8 = scalar_select 0, %s7, %s5
  $region1: #{tpu_custom_call.1} parent=0
    #allocation2 [shape = 'u8[4096]{0}', space=vmem, size = 0x1000, scoped, tag = 'output window, operand 0, single buffered']
    #allocation3 [shape = 's32[1]{0}', space=sflag, size = 0x4, scoped, tag = 'scoped memory for tpu_custom_call.1']
    %9 = vsyncpa [#allocation3], 0
    // Predicated region
    $region2: #{tpu_custom_call.1} parent=1 // pred_check
      _
    $region3: #{tpu_custom_call.1} parent=1 // pred_check_branch
      %11 = sbr.rel (0) target = $region5
    $region4: #{tpu_custom_call.1} parent=1 // pred_region
      _
    $region5: #{tpu_custom_call.1} parent=1 // pred_fallthru
      _
    // Predicated region
    $region6: #{tpu_custom_call.1} parent=1 // pred_check
      _
    $region7: #{tpu_custom_call.1} parent=1 // pred_check_branch
      %13 = sbr.rel (0) target = $region9
    $region8: #{tpu_custom_call.1} parent=1 // pred_region
      _
    $region9: #{tpu_custom_call.1} parent=1 // pred_fallthru
      _
    // Predicated region
    $region10: #{tpu_custom_call.1} parent=1 // pred_check
      _
    $region11: #{tpu_custom_call.1} parent=1 // pred_check_branch
      %15 = sbr.rel (0) target = $region13
    $region12: #{tpu_custom_call.1} parent=1 // pred_region
      _
    $region13: #{tpu_custom_call.1} parent=1 // pred_fallthru
      _
    // Predicated region
    $region14: #{tpu_custom_call.1} parent=1 // pred_check
      _
    $region15: #{tpu_custom_call.1} parent=1 // pred_check_branch
      %17 = sbr.rel (0) target = $region17
    $region16: #{tpu_custom_call.1} parent=1 // pred_region
      _
    $region17: #{tpu_custom_call.1} parent=1 // pred_fallthru
      _
    %v18 = vld [vmem:[%s1] sm:$0xf]
    %v19 = vld [vmem:[%s1 + $0x4] sm:$0xf]
    %v20 = vunpack.c.l.bf16 %v18
    %v21 = vunpack.c.l.bf16 %v19
    %v22 = vld [vmem:[%s2] sm:$0xff]
    %v23 = vld [vmem:[%s0] sm:$0xff]
    %v24 = vld [vmem:[%s3 + $0x106] sm:$0x1]
    %v25 = vld [vmem:[%s3 + $0x107] sm:$0x1]
    %vm26 = vcmask 261120
    %v27 = vsel %vm26, %v23, 0.0
    %v28 = vrot.slane %v27, 4
    %v29 = vadd.f32 %v27, %v28
    %v30 = vrot.slane %v29, 2
    %v31 = vadd.f32 %v29, %v30
    %v32 = vrot.slane %v31, 1
    %v33 = vadd.f32 %v31, %v32
    %v34 = vrcp.pop 8.0
    %v35 = vmul.f32 8.0, %v34
    %v36 = vsub.f32 1.0, %v35
    %v37 = vmul.f32 %v34, %v36
    %v38 = vadd.f32 %v34, %v37
    %vm39 = vweird.f32 %v34
    %v40 = vsel %vm39, %v34, %v38
    %v41 = vmul.f32 %v33, %v40
    %v42 = vsub.f32 %v23, %v41
    %v43 = vmul.f32 %v42, %v42
    %v44 = vsel %vm26, %v43, 0.0
    %v45 = vrot.slane %v44, 4
    %v46 = vadd.f32 %v44, %v45
    %v47 = vrot.slane %v46, 2
    %v48 = vadd.f32 %v46, %v47
    %v49 = vrot.slane %v48, 1
    %v50 = vadd.f32 %v48, %v49
    %v51 = vmul.f32 %v50, %v40
    %v52 = vadd.f32 %v51, 1e-05
    %v53 = vrsqrt.pop %v52
    %v54 = vmul.f32 %v53, %v52
    %v55 = vmul.f32 %v54, %v53
    %v56 = vmul.f32 0.5, %v55
    %v57 = vsub.f32 1.5, %v56
    %v58 = vmul.f32 %v53, %v57
    %vm59 = vweird.f32 %v52
    %vm60 = vweird.f32 %v53
    %vm61 = vmor %vm59, %vm60
    %v62 = vsel %vm61, %v53, %v58
    %v63 = vmul.f32 %v42, %v62
    %v64 = vperm.slane %v24, 0
    %v65 = vmul.f32 %v63, %v64
    %v66 = vperm.slane %v25, 0
    %v67 = vadd.f32 %v65, %v66
    %v68 = vld [vmem:[%s3] sm:$0xff]
    %v69 = vld [vmem:[%s3 + $0x8] sm:$0xff]
    %v70 = vld [vmem:[%s3 + $0x10] sm:$0xff]
    %v71 = vld [vmem:[%s3 + $0x18] sm:$0xff]
    %v72 = vld [vmem:[%s3 + $0x20] sm:$0xff]
    %v73 = vld [vmem:[%s3 + $0x28] sm:$0xff]
    %v74 = vld [vmem:[%s3 + $0x30] sm:$0xff]
    %v75 = vld [vmem:[%s3 + $0x38] sm:$0xff]
    %v76 = vld [vmem:[%s3 + $0x40] sm:$0xff]
    %v77 = vld [vmem:[%s3 + $0x48] sm:$0xff]
    %v78 = vld [vmem:[%s3 + $0x50] sm:$0xff]
    %v79 = vld [vmem:[%s3 + $0x58] sm:$0xff]
    %v80 = vld [vmem:[%s3 + $0x60] sm:$0xff]
    %v81 = vld [vmem:[%s3 + $0x68] sm:$0xff]
    %v82 = vld [vmem:[%s3 + $0x70] sm:$0xff]
    %v83 = vld [vmem:[%s3 + $0x78] sm:$0xff]
    %v84 = vld [vmem:[%s3 + $0x100] sm:$0x1]
    %v85 = vld [vmem:[%s3 + $0x101] sm:$0x1]
    %v86 = vld [vmem:[%s3 + $0x102] sm:$0x1]
    %v88 = vsel %vm26, %v67, 0
    %90 = vmatpush.msra.mxu0 0.0
    %91 = vmatpush.msra.mxu0 0.0
    %92 = vmatpush.msra.mxu0 0.0
    %93 = vmatpush.msra.mxu0 0.0
    %94 = vmatpush.msra.mxu0 0.0
    %95 = vmatpush.msra.mxu0 0.0
    %96 = vmatpush.msra.mxu0 0.0
    %97 = vmatpush.msra.mxu0 0.0
    %98 = vmatpush.msra.mxu0 0.0
    %99 = vmatpush.msra.mxu0 0.0
    %100 = vmatpush.msra.mxu0 0.0
    %101 = vmatpush.msra.mxu0 0.0
    %102 = vmatpush.msra.mxu0 %v71
    %103 = vmatpush.msra.mxu0 %v70
    %104 = vmatpush.msra.mxu0 %v69
    %105 = vmatpush.msra.mxu0 %v68
    %106 = vmatmul.f32.gmra.mxu0 %v88
    %v107 = vpop.f32.mrf.mxu0
    %v108 = vadd.f32 0.0, %v107
    %109 = vdwg.mxu0
    %110 = vmatpush.msra.mxu0 0.0
    %111 = vmatpush.msra.mxu0 0.0
    %112 = vmatpush.msra.mxu0 0.0
    %113 = vmatpush.msra.mxu0 0.0
    %114 = vmatpush.msra.mxu0 0.0
    %115 = vmatpush.msra.mxu0 0.0
    %116 = vmatpush.msra.mxu0 0.0
    %117 = vmatpush.msra.mxu0 0.0
    %118 = vmatpush.msra.mxu0 0.0
    %119 = vmatpush.msra.mxu0 0.0
    %120 = vmatpush.msra.mxu0 0.0
    %121 = vmatpush.msra.mxu0 0.0
    %122 = vmatpush.msra.mxu0 %v75
    %123 = vmatpush.msra.mxu0 %v74
    %124 = vmatpush.msra.mxu0 %v73
    %125 = vmatpush.msra.mxu0 %v72
    %126 = vmatmul.f32.gmra.mxu0 %v88
    %v127 = vpop.f32.mrf.mxu0
    %v128 = vadd.f32 0.0, %v127
    %129 = vdwg.mxu0
    %v130 = vperm.slane %v84, 0
    %vm131 = vcmask 130048
    %v133 = vsel %vm131, %v20, 0
    %v136 = vsel %vm131, %v21, 0
    %138 = vmatpush.msra.mxu0 0.0
    %139 = vmatpush.msra.mxu0 0.0
    %140 = vmatpush.msra.mxu0 0.0
    %141 = vmatpush.msra.mxu0 0.0
    %142 = vmatpush.msra.mxu0 0.0
    %143 = vmatpush.msra.mxu0 0.0
    %144 = vmatpush.msra.mxu0 0.0
    %145 = vmatpush.msra.mxu0 0.0
    %146 = vmatpush.msra.mxu0 0.0
    %147 = vmatpush.msra.mxu0 0.0
    %148 = vmatpush.msra.mxu0 0.0
    %149 = vmatpush.msra.mxu0 0.0
    %150 = vmatpush.msra.mxu0 0.0
    %151 = vmatpush.msra.mxu0 0.0
    %152 = vmatpush.msra.mxu0 %v128
    %153 = vmatpush.msra.mxu0 %v108
    %154 = vmatmul.f32.gmra.mxu0 %v133
    %v155 = vpop.f32.mrf.mxu0
    %v156 = vadd.f32 %v130, %v155
    %157 = vmatmul.f32.gmra.mxu0 %v136
    %v158 = vpop.f32.mrf.mxu0
    %v159 = vadd.f32 %v130, %v158
    %160 = vdwg.mxu0
    %v161 = vmax.f32 %v156, 0.0
    %v162 = vmax.f32 %v159, 0.0
    %v163 = vperm.slane %v85, 0
    %v165 = vsel %vm26, %v161, 0
    %v168 = vsel %vm26, %v162, 0
    %170 = vmatpush.msra.mxu0 0.0
    %171 = vmatpush.msra.mxu0 0.0
    %172 = vmatpush.msra.mxu0 0.0
    %173 = vmatpush.msra.mxu0 0.0
    %174 = vmatpush.msra.mxu0 0.0
    %175 = vmatpush.msra.mxu0 0.0
    %176 = vmatpush.msra.mxu0 0.0
    %177 = vmatpush.msra.mxu0 0.0
    %178 = vmatpush.msra.mxu0 0.0
    %179 = vmatpush.msra.mxu0 0.0
    %180 = vmatpush.msra.mxu0 0.0
    %181 = vmatpush.msra.mxu0 0.0
    %182 = vmatpush.msra.mxu0 %v79
    %183 = vmatpush.msra.mxu0 %v78
    %184 = vmatpush.msra.mxu0 %v77
    %185 = vmatpush.msra.mxu0 %v76
    %186 = vmatmul.f32.gmra.mxu0 %v165
    %v187 = vpop.f32.mrf.mxu0
    %v188 = vadd.f32 %v163, %v187
    %189 = vmatmul.f32.gmra.mxu0 %v168
    %v190 = vpop.f32.mrf.mxu0
    %v191 = vadd.f32 %v163, %v190
    %192 = vdwg.mxu0
    %v193 = vmax.f32 %v188, 0.0
    %v194 = vmax.f32 %v191, 0.0
    %v195 = vperm.slane %v86, 0
    %v197 = vsel %vm26, %v193, 0
    %v200 = vsel %vm26, %v194, 0
    %202 = vmatpush.msra.mxu0 0.0
    %203 = vmatpush.msra.mxu0 0.0
    %204 = vmatpush.msra.mxu0 0.0
    %205 = vmatpush.msra.mxu0 0.0
    %206 = vmatpush.msra.mxu0 0.0
    %207 = vmatpush.msra.mxu0 0.0
    %208 = vmatpush.msra.mxu0 0.0
    %209 = vmatpush.msra.mxu0 0.0
    %210 = vmatpush.msra.mxu0 0.0
    %211 = vmatpush.msra.mxu0 0.0
    %212 = vmatpush.msra.mxu0 0.0
    %213 = vmatpush.msra.mxu0 0.0
    %214 = vmatpush.msra.mxu0 %v83
    %215 = vmatpush.msra.mxu0 %v82
    %216 = vmatpush.msra.mxu0 %v81
    %217 = vmatpush.msra.mxu0 %v80
    %218 = vmatmul.f32.gmra.mxu0 %v197
    %v219 = vpop.f32.mrf.mxu0
    %v220 = vadd.f32 %v195, %v219
    %221 = vmatmul.f32.gmra.mxu0 %v200
    %v222 = vpop.f32.mrf.mxu0
    %v223 = vadd.f32 %v195, %v222
    %224 = vdwg.mxu0
    %v225 = vmax.f32 %v220, 0.0
    %v226 = vmax.f32 %v223, 0.0
    %227 = vxpose.xlu0.b32.start [1/16] %v20, 128
    %228 = vxpose.xlu0.b32.cont [2/16] %v21, 128
    %229 = vxpose.xlu0.b32.cont [3/16] 0.0, 128
    %230 = vxpose.xlu0.b32.cont [4/16] 0.0, 128
    %231 = vxpose.xlu0.b32.cont [5/16] 0.0, 128
    %232 = vxpose.xlu0.b32.cont [6/16] 0.0, 128
    %233 = vxpose.xlu0.b32.cont [7/16] 0.0, 128
    %234 = vxpose.xlu0.b32.cont [8/16] 0.0, 128
    %235 = vxpose.xlu0.b32.cont [9/16] 0.0, 128
    %236 = vxpose.xlu0.b32.cont [10/16] 0.0, 128
    %237 = vxpose.xlu0.b32.cont [11/16] 0.0, 128
    %238 = vxpose.xlu0.b32.cont [12/16] 0.0, 128
    %239 = vxpose.xlu0.b32.cont [13/16] 0.0, 128
    %240 = vxpose.xlu0.b32.cont [14/16] 0.0, 128
    %241 = vxpose.xlu0.b32.cont [15/16] 0.0, 128
    %242 = vxpose.xlu0.b32.end [16/16] 0.0, 128
    %v243 = vpop.trf.xlu0
    %v244 = vpop.trf.xlu0
    %v245 = vpop.trf.xlu0
    %v246 = vpop.trf.xlu0
    %v247 = vpop.trf.xlu0
    %v248 = vpop.trf.xlu0
    %v249 = vpop.trf.xlu0
    %v250 = vpop.trf.xlu0
    %v251 = vpop.trf.xlu0
    %v252 = vpop.trf.xlu0
    %v253 = vpop.trf.xlu0
    %v254 = vpop.trf.xlu0
    %v255 = vpop.trf.xlu0
    %v256 = vpop.trf.xlu0
    %v257 = vpop.trf.xlu0
    %v258 = vpop.trf.xlu0
    %v260 = vsel %vm131, %v243, 0
    %262 = vmatpush.msra.mxu0 0.0
    %263 = vmatpush.msra.mxu0 0.0
    %264 = vmatpush.msra.mxu0 0.0
    %265 = vmatpush.msra.mxu0 0.0
    %266 = vmatpush.msra.mxu0 0.0
    %267 = vmatpush.msra.mxu0 0.0
    %268 = vmatpush.msra.mxu0 0.0
    %269 = vmatpush.msra.mxu0 0.0
    %270 = vmatpush.msra.mxu0 0.0
    %271 = vmatpush.msra.mxu0 0.0
    %272 = vmatpush.msra.mxu0 0.0
    %273 = vmatpush.msra.mxu0 0.0
    %274 = vmatpush.msra.mxu0 0.0
    %275 = vmatpush.msra.mxu0 0.0
    %276 = vmatpush.msra.mxu0 %v226
    %277 = vmatpush.msra.mxu0 %v225
    %278 = vmatmul.f32.gmra.mxu0 %v260
    %v279 = vpop.f32.mrf.mxu0
    %v280 = vadd.f32 0.0, %v279
    %281 = vdwg.mxu0
    %283 = vset.pattern.permute.xlu0 0
    %284 = vperm.xlu0 %283, %v22
    %v285 = vpop.permute.xlu0 %284
    %v287 = vmul.f32 %v280, %v285
    %v288 = vld [vmem:[%s3 + $0x80] sm:$0xff]
    %v289 = vld [vmem:[%s3 + $0x88] sm:$0xff]
    %v290 = vld [vmem:[%s3 + $0x90] sm:$0xff]
    %v291 = vld [vmem:[%s3 + $0x98] sm:$0xff]
    %v292 = vld [vmem:[%s3 + $0xa0] sm:$0xff]
    %v293 = vld [vmem:[%s3 + $0xa8] sm:$0xff]
    %v294 = vld [vmem:[%s3 + $0xb0] sm:$0xff]
    %v295 = vld [vmem:[%s3 + $0xb8] sm:$0xff]
    %v296 = vld [vmem:[%s3 + $0xc0] sm:$0xff]
    %v297 = vld [vmem:[%s3 + $0xc8] sm:$0xff]
    %v298 = vld [vmem:[%s3 + $0xd0] sm:$0xff]
    %v299 = vld [vmem:[%s3 + $0xd8] sm:$0xff]
    %v300 = vld [vmem:[%s3 + $0xe0] sm:$0xff]
    %v301 = vld [vmem:[%s3 + $0xe8] sm:$0xff]
    %v302 = vld [vmem:[%s3 + $0xf0] sm:$0xff]
    %v303 = vld [vmem:[%s3 + $0xf8] sm:$0xff]
    %v304 = vld [vmem:[%s3 + $0x103] sm:$0x1]
    %v305 = vld [vmem:[%s3 + $0x104] sm:$0x1]
    %v306 = vld [vmem:[%s3 + $0x105] sm:$0x1]
    %v308 = vsel %vm26, %v287, 0
    %310 = vmatpush.msra.mxu0 0.0
    %311 = vmatpush.msra.mxu0 0.0
    %312 = vmatpush.msra.mxu0 0.0
    %313 = vmatpush.msra.mxu0 0.0
    %314 = vmatpush.msra.mxu0 0.0
    %315 = vmatpush.msra.mxu0 0.0
    %316 = vmatpush.msra.mxu0 0.0
    %317 = vmatpush.msra.mxu0 0.0
    %318 = vmatpush.msra.mxu0 0.0
    %319 = vmatpush.msra.mxu0 0.0
    %320 = vmatpush.msra.mxu0 0.0
    %321 = vmatpush.msra.mxu0 0.0
    %322 = vmatpush.msra.mxu0 %v291
    %323 = vmatpush.msra.mxu0 %v290
    %324 = vmatpush.msra.mxu0 %v289
    %325 = vmatpush.msra.mxu0 %v288
    %326 = vmatmul.f32.gmra.mxu0 %v308
    %v327 = vpop.f32.mrf.mxu0
    %v328 = vadd.f32 0.0, %v327
    %329 = vdwg.mxu0
    %330 = vmatpush.msra.mxu0 0.0
    %331 = vmatpush.msra.mxu0 0.0
    %332 = vmatpush.msra.mxu0 0.0
    %333 = vmatpush.msra.mxu0 0.0
    %334 = vmatpush.msra.mxu0 0.0
    %335 = vmatpush.msra.mxu0 0.0
    %336 = vmatpush.msra.mxu0 0.0
    %337 = vmatpush.msra.mxu0 0.0
    %338 = vmatpush.msra.mxu0 0.0
    %339 = vmatpush.msra.mxu0 0.0
    %340 = vmatpush.msra.mxu0 0.0
    %341 = vmatpush.msra.mxu0 0.0
    %342 = vmatpush.msra.mxu0 %v295
    %343 = vmatpush.msra.mxu0 %v294
    %344 = vmatpush.msra.mxu0 %v293
    %345 = vmatpush.msra.mxu0 %v292
    %346 = vmatmul.f32.gmra.mxu0 %v308
    %v347 = vpop.f32.mrf.mxu0
    %v348 = vadd.f32 0.0, %v347
    %349 = vdwg.mxu0
    %v350 = vperm.slane %v304, 0
    %351 = vmatpush.msra.mxu0 0.0
    %352 = vmatpush.msra.mxu0 0.0
    %353 = vmatpush.msra.mxu0 0.0
    %354 = vmatpush.msra.mxu0 0.0
    %355 = vmatpush.msra.mxu0 0.0
    %356 = vmatpush.msra.mxu0 0.0
    %357 = vmatpush.msra.mxu0 0.0
    %358 = vmatpush.msra.mxu0 0.0
    %359 = vmatpush.msra.mxu0 0.0
    %360 = vmatpush.msra.mxu0 0.0
    %361 = vmatpush.msra.mxu0 0.0
    %362 = vmatpush.msra.mxu0 0.0
    %363 = vmatpush.msra.mxu0 0.0
    %364 = vmatpush.msra.mxu0 0.0
    %365 = vmatpush.msra.mxu0 %v348
    %366 = vmatpush.msra.mxu0 %v328
    %367 = vmatmul.f32.gmra.mxu0 %v133
    %v368 = vpop.f32.mrf.mxu0
    %v369 = vadd.f32 %v350, %v368
    %370 = vmatmul.f32.gmra.mxu0 %v136
    %v371 = vpop.f32.mrf.mxu0
    %v372 = vadd.f32 %v350, %v371
    %373 = vdwg.mxu0
    %v374 = vmax.f32 %v369, 0.0
    %v375 = vmax.f32 %v372, 0.0
    %v376 = vperm.slane %v305, 0
    %v378 = vsel %vm26, %v374, 0
    %v381 = vsel %vm26, %v375, 0
    %383 = vmatpush.msra.mxu0 0.0
    %384 = vmatpush.msra.mxu0 0.0
    %385 = vmatpush.msra.mxu0 0.0
    %386 = vmatpush.msra.mxu0 0.0
    %387 = vmatpush.msra.mxu0 0.0
    %388 = vmatpush.msra.mxu0 0.0
    %389 = vmatpush.msra.mxu0 0.0
    %390 = vmatpush.msra.mxu0 0.0
    %391 = vmatpush.msra.mxu0 0.0
    %392 = vmatpush.msra.mxu0 0.0
    %393 = vmatpush.msra.mxu0 0.0
    %394 = vmatpush.msra.mxu0 0.0
    %395 = vmatpush.msra.mxu0 %v299
    %396 = vmatpush.msra.mxu0 %v298
    %397 = vmatpush.msra.mxu0 %v297
    %398 = vmatpush.msra.mxu0 %v296
    %399 = vmatmul.f32.gmra.mxu0 %v378
    %v400 = vpop.f32.mrf.mxu0
    %v401 = vadd.f32 %v376, %v400
    %402 = vmatmul.f32.gmra.mxu0 %v381
    %v403 = vpop.f32.mrf.mxu0
    %v404 = vadd.f32 %v376, %v403
    %405 = vdwg.mxu0
    %v406 = vmax.f32 %v401, 0.0
    %v407 = vmax.f32 %v404, 0.0
    %v408 = vperm.slane %v306, 0
    %v410 = vsel %vm26, %v406, 0
    %v413 = vsel %vm26, %v407, 0
    %415 = vmatpush.msra.mxu0 0.0
    %416 = vmatpush.msra.mxu0 0.0
    %417 = vmatpush.msra.mxu0 0.0
    %418 = vmatpush.msra.mxu0 0.0
    %419 = vmatpush.msra.mxu0 0.0
    %420 = vmatpush.msra.mxu0 0.0
    %421 = vmatpush.msra.mxu0 0.0
    %422 = vmatpush.msra.mxu0 0.0
    %423 = vmatpush.msra.mxu0 0.0
    %424 = vmatpush.msra.mxu0 0.0
    %425 = vmatpush.msra.mxu0 0.0
    %426 = vmatpush.msra.mxu0 0.0
    %427 = vmatpush.msra.mxu0 %v303
    %428 = vmatpush.msra.mxu0 %v302
    %429 = vmatpush.msra.mxu0 %v301
    %430 = vmatpush.msra.mxu0 %v300
    %431 = vmatmul.f32.gmra.mxu0 %v410
    %v432 = vpop.f32.mrf.mxu0
    %v433 = vadd.f32 %v408, %v432
    %434 = vmatmul.f32.gmra.mxu0 %v413
    %v435 = vpop.f32.mrf.mxu0
    %v436 = vadd.f32 %v408, %v435
    %437 = vdwg.mxu0
    %438 = vmatpush.msra.mxu0 0.0
    %439 = vmatpush.msra.mxu0 0.0
    %440 = vmatpush.msra.mxu0 0.0
    %441 = vmatpush.msra.mxu0 0.0
    %442 = vmatpush.msra.mxu0 0.0
    %443 = vmatpush.msra.mxu0 0.0
    %444 = vmatpush.msra.mxu0 0.0
    %445 = vmatpush.msra.mxu0 0.0
    %446 = vmatpush.msra.mxu0 0.0
    %447 = vmatpush.msra.mxu0 0.0
    %448 = vmatpush.msra.mxu0 0.0
    %449 = vmatpush.msra.mxu0 0.0
    %450 = vmatpush.msra.mxu0 0.0
    %451 = vmatpush.msra.mxu0 0.0
    %452 = vmatpush.msra.mxu0 %v436
    %453 = vmatpush.msra.mxu0 %v433
    %454 = vmatmul.f32.gmra.mxu0 %v260
    %v455 = vpop.f32.mrf.mxu0
    %v456 = vadd.f32 0.0, %v455
    %457 = vdwg.mxu0
    %v458 = vmul.f32 %v456, %v285
    %459 = vst.msk [vmem:[#allocation2] sm:$0xff] %vm26, %v458
    // Predicated region
    $region18: #{tpu_custom_call.1} parent=1 // pred_check
      _
    $region19: #{tpu_custom_call.1} parent=1 // pred_check_branch
      %461 = sbr.rel (0) target = $region21
    $region20: #{tpu_custom_call.1} parent=1 // pred_region
      %463 = vsyncadd [#allocation3], 0
      %s465 = sshll.u32 [#allocation2], 4
      %s466 = int_to_ptr.vmem [resolvable:$true] %s465
      %s467 = sshll.u32 %s4, 4
      %s468 = int_to_ptr.hbm [resolvable:$true] %s467
      %470 = dma.vmem_to_hbm [thread:$0]  %s466, 128, %s468, [#allocation3]
    $region21: #{tpu_custom_call.1} parent=1 // pred_fallthru
      _
    // Predicated region
    $region22: #{tpu_custom_call.1} parent=1 // pred_check
      _
    $region23: #{tpu_custom_call.1} parent=1 // pred_check_branch
      %472 = sbr.rel (0) target = $region25
    $region24: #{tpu_custom_call.1} parent=1 // pred_region
      %474 = dma.done [#allocation3], 128
    $region25: #{tpu_custom_call.1} parent=1 // pred_fallthru
      _
    %475 = vsyncpa [#allocation3], 1

</llo_original>
